<compile_context>
chip_gen: v6e
topology: v6e:2x2x1
jax: 0.10.0
libtpu: 0.0.40
codegen_flags: <defaults>
</compile_context>

<pallas_src>
import math

import jax
import jax.numpy as jnp
from jax.experimental import pallas as pl
from jax.experimental.pallas import tpu as pltpu


_TARGET_BLOCK_BYTES = 4 * 1024 * 1024   # ~4 MiB per f32 block (out + base each double-buffered)
_VMEM_LIMIT_BYTES = 32 * 1024 * 1024    # fits v5e/v6e/v7x; headroom over the ~16 MiB working set


def _round_up(x: int, m: int) -> int:
    return ((x + m - 1) // m) * m


def rotary_embedding_forward(
    inv_freq: jax.Array,
    seq_len: int,
    *,
    out_dtype=None,
    max_tile_rows: int | None = None,
) -> jax.Array:
    """Pallas equivalent of RotaryEmbedding.forward(seq_len).

    inv_freq: (dim // 2,) buffer.  Returns (seq_len, dim).
    out_dtype: defaults to inv_freq.dtype (module semantics); pass jnp.bfloat16
               to halve the HBM writeback if reduced precision is acceptable.
    max_tile_rows: test hook to force small tiles / multi-step grids.
    """
    half = int(inv_freq.shape[0])
    dim = 2 * half
    out_dtype = jnp.dtype(inv_freq.dtype) if out_dtype is None else jnp.dtype(out_dtype)

    if seq_len == 0:
        # Matches the PyTorch early-return (no kernel launch).
        return jnp.empty((0, dim), dtype=out_dtype)

    # --- lane-density fold -------------------------------------------------
    # Pack `fold` consecutive positions per stored row so the stored lane width
    # is a multiple of 128 (unmasked vst).  Generalized to any dim < 128 via
    # lcm(dim, 128) // dim == 128 // gcd(dim, 128)  (handles dim=96, 48, ...).
    fold = (128 // math.gcd(dim, 128)) if dim < 128 else 1
    row_dim = dim * fold                       # multiple of 128 whenever dim < 128
    rows = -(-seq_len // fold)                 # ceil: pad rows, trim after reshape

    # --- tile sizing by byte budget ----------------------------------------
    bytes_per_row_f32 = row_dim * 4            # base block (f32) is the larger buffer
    tile_r = max(8, (_TARGET_BLOCK_BYTES // bytes_per_row_f32) // 8 * 8)
    if rows >= 32:
        # Keep >= 4 grid steps so the "parallel" axis shards across v7x's 2 TCs.
        tile_r = min(tile_r, _round_up(-(-rows // 4), 8))
    if max_tile_rows is not None:
        tile_r = min(tile_r, max(8, (max_tile_rows // 8) * 8))
    if tile_r >= rows:
        tile_r = rows                          # single full-extent block (tiny tables)
    grid = (pl.cdiv(rows, tile_r),)
    positions_per_tile = tile_r * fold

    # --- host-side constants (f32, tiny vs. table writeback) ---------------
    inv_cat = jnp.concatenate([inv_freq, inv_freq]).astype(jnp.float32)     # (dim,)
    inv_tiled = jnp.tile(inv_cat, fold)                                     # inv_cat[l % dim]
    lane_pos = jnp.repeat(jnp.arange(fold, dtype=jnp.int32), dim)           # l // dim
    # base[i, l] = (i*fold + l//dim) * inv_freq[l % half]  — exact single product.
    row_pos = jnp.arange(tile_r, dtype=jnp.int32)[:, None] * fold + lane_pos[None, :]
    base = row_pos.astype(jnp.float32) * inv_tiled[None, :]                 # (tile_r, row_dim)
    scale = inv_tiled.reshape(1, row_dim)                                   # (1, row_dim)

    def kernel(base_ref, scale_ref, out_ref):
        # out[i, l] = base[i, l] + (tile_start_position) * inv[l % dim]
        row0 = (pl.program_id(0) * positions_per_tile).astype(jnp.float32)
        out_ref[...] = (base_ref[...] + row0 * scale_ref[...]).astype(out_ref.dtype)

    itemsize = out_dtype.itemsize
    cost = pl.CostEstimate(
        flops=2 * rows * row_dim,
        transcendentals=0,
        bytes_accessed=rows * row_dim * itemsize + tile_r * row_dim * 4 + row_dim * 4,
    )

    out = pl.pallas_call(
        kernel,
        out_shape=jax.ShapeDtypeStruct((rows, row_dim), out_dtype),
        grid_spec=pltpu.PrefetchScalarGridSpec(
            num_scalar_prefetch=0,
            grid=grid,
            in_specs=[
                pl.BlockSpec((tile_r, row_dim), lambda i: (0, 0)),   # base: constant block, DMA'd once/core
                pl.BlockSpec((1, row_dim), lambda i: (0, 0)),        # scale row
            ],
            out_specs=pl.BlockSpec((tile_r, row_dim), lambda i: (i, 0)),
        ),
        compiler_params=pltpu.CompilerParams(
            dimension_semantics=("parallel",),
            vmem_limit_bytes=_VMEM_LIMIT_BYTES,
        ),
        cost_estimate=cost,
    )(base, scale)

    # Row-major reshape back to position-major layout: a layout no-op.
    flat = out.reshape(rows * fold, dim)
    if rows * fold != seq_len:
        # Awkward remainder: trim the few padded positions.  Costs one extra XLA
        # copy but keeps every kernel store lane-dense (vs. the ~4.5x masked-store
        # penalty of a dim-wide output).
        flat = flat[:seq_len]
    return flat


def make_inv_freq(dim: int) -> jax.Array:
    # Deterministic buffer init, identical to the nn.Module __init__.
    return 1.0 / (10000.0 ** (jnp.arange(0, dim, 2, dtype=jnp.float32) / dim))


def _reference(inv_freq: jax.Array, seq_len: int) -> jax.Array:
    if seq_len == 0:
        return jnp.empty((0, inv_freq.shape[0] * 2), dtype=inv_freq.dtype)
    t = jnp.arange(seq_len, dtype=inv_freq.dtype)
    freqs = jnp.einsum("i,j->ij", t, inv_freq)
    return jnp.concatenate([freqs, freqs], axis=-1)


if __name__ == "__main__":
    _ = jax.random.PRNGKey(0)  # forward is deterministic; key unused beyond spec.

    # Small shapes consistent with the module: dim=32, seq_len=8 (fold=4, grid=1).
    dim, seq_len = 32, 8
    inv_freq = make_inv_freq(dim)
    out = jax.block_until_ready(rotary_embedding_forward(inv_freq, seq_len))
    ref = _reference(inv_freq, seq_len)
    assert out.shape == (seq_len, dim), out.shape
    assert out.dtype == inv_freq.dtype, out.dtype
    assert jnp.allclose(out, ref, atol=1e-5, rtol=1e-5), "mismatch (fold path)"

    # Awkward seq_len: fold stays lane-dense, trailing rows trimmed.
    out2 = jax.block_until_ready(rotary_embedding_forward(inv_freq, 7))
    assert out2.shape == (7, dim)
    assert jnp.allclose(out2, _reference(inv_freq, 7), atol=1e-5, rtol=1e-5), "mismatch (remainder)"

    # dim that does not divide 128 (fold = lcm(96,128)//96 = 4).
    inv_freq96 = make_inv_freq(96)
    out96 = jax.block_until_ready(rotary_embedding_forward(inv_freq96, 12))
    assert out96.shape == (12, 96)
    assert jnp.allclose(out96, _reference(inv_freq96, 12), atol=1e-5, rtol=1e-5), "mismatch (dim=96)"

    # Lane-dense dim (>=128), forced multi-tile grid with a partial last tile.
    inv_freq128 = make_inv_freq(128)
    out3 = jax.block_until_ready(rotary_embedding_forward(inv_freq128, 40, max_tile_rows=16))
    assert out3.shape == (40, 128)
    assert jnp.allclose(out3, _reference(inv_freq128, 40), atol=1e-5, rtol=1e-5), "mismatch (tiled)"

    # Optional reduced-precision output (halves HBM writeback).
    out_bf16 = jax.block_until_ready(
        rotary_embedding_forward(inv_freq128, 16, out_dtype=jnp.bfloat16))
    assert out_bf16.dtype == jnp.bfloat16 and out_bf16.shape == (16, 128)
    assert jnp.allclose(out_bf16.astype(jnp.float32), _reference(inv_freq128, 16),
                        atol=1e-2, rtol=1e-2), "mismatch (bf16)"

    # seq_len == 0 early-return path (no kernel launch).
    assert rotary_embedding_forward(inv_freq, 0).shape == (0, dim)

    print("KERNEL_OK")
</pallas_src>

<mosaic_0001>
module attributes {stable_mosaic.version = 11 : i64} {
  func.func @kernel(%arg0: i32, %arg1: memref<2x128xf32, #tpu.memory_space<vmem>>, %arg2: memref<1x128xf32, #tpu.memory_space<vmem>>, %arg3: memref<2x128xf32, #tpu.memory_space<vmem>>) attributes {dimension_semantics = [#tpu.dimension_semantics<parallel>], iteration_bounds = array<i64: 1>, scalar_prefetch = 0 : i64, scratch_operands = 0 : i64, tpu.core_type = #tpu.core_type<tc>, window_params = [{pipeline_mode = #tpu.pipeline_mode<synchronous>, transform_indices = @transform_0, window_bounds = array<i64: 2, 128>}, {pipeline_mode = #tpu.pipeline_mode<synchronous>, transform_indices = @transform_1, window_bounds = array<i64: 1, 128>}, {transform_indices = @transform_2, window_bounds = array<i64: 2, 128>}]} {
    %c8_i32 = arith.constant 8 : i32
    %0 = arith.muli %arg0, %c8_i32 : i32
    %1 = arith.sitofp %0 : i32 to f32
    %c0 = arith.constant 0 : index
    %c0_0 = arith.constant 0 : index
    %2 = vector.load %arg1[%c0, %c0_0] : memref<2x128xf32, #tpu.memory_space<vmem>>, vector<2x128xf32>
    %c0_1 = arith.constant 0 : index
    %c0_2 = arith.constant 0 : index
    %3 = vector.load %arg2[%c0_1, %c0_2] : memref<1x128xf32, #tpu.memory_space<vmem>>, vector<1x128xf32>
    %4 = vector.broadcast %1 : f32 to vector<1x128xf32>
    %5 = arith.mulf %4, %3 : vector<1x128xf32>
    %6 = vector.broadcast %5 : vector<1x128xf32> to vector<2x128xf32>
    %7 = arith.addf %2, %6 : vector<2x128xf32>
    %c0_3 = arith.constant 0 : index
    %c0_4 = arith.constant 0 : index
    %8 = vector.load %arg3[%c0_3, %c0_4] : memref<2x128xf32, #tpu.memory_space<vmem>>, vector<2x128xf32>
    tpu.vector_store %arg3[%c0_3, %c0_4], %7 {strides = array<i32>} : memref<2x128xf32, #tpu.memory_space<vmem>>, vector<2x128xf32>,
    return
  }
  func.func @transform_0(%arg0: i32) -> (i32, i32) {
    %c0_i32 = arith.constant 0 : i32
    %c0_i32_0 = arith.constant 0 : i32
    %c0_i32_1 = arith.constant 0 : i32
    return %c0_i32, %c0_i32_0 : i32, i32
  }
  func.func @transform_1(%arg0: i32) -> (i32, i32) {
    %c0_i32 = arith.constant 0 : i32
    %c0_i32_0 = arith.constant 0 : i32
    %c0_i32_1 = arith.constant 0 : i32
    return %c0_i32, %c0_i32_0 : i32, i32
  }
  func.func @transform_2(%arg0: i32) -> (i32, i32) {
    %c0_i32 = arith.constant 0 : i32
    %c0_i32_0 = arith.constant 0 : i32
    return %arg0, %c0_i32 : i32, i32
  }
}

</mosaic_0001>

<llo_original>
// kernel: tpu_custom_call.1
$region0: #{tpu_custom_call.1}
  #allocation0 [shape = 'u32[]', space=smem, size = 0x4, offset = 0x4, fixed_abs, tag = 'smem constant byte address 0x4 - core index']
  #allocation1 [shape = 'u32[144,128]{1,0:T(1,128)}', space=vmem, size = 0x12000, scoped, tag = 'internal scratch']
  %s0 = inlined_call_operand.hbm [shape: f32[2,128], index: 0, kind: input, shape index: {}]
  %s1 = inlined_call_operand.vmem [shape: f32[1,128], index: 1, kind: input, shape index: {}]
  %s2 = inlined_call_operand.hbm [shape: f32[2,128], index: 2, kind: output, shape index: {}]
  %s3 = sld [smem:[#allocation0]]
  $region22: #{tpu_custom_call.1} parent=0
    _
  %s5 = ssub.s32 1, %s3
  %s6 = scalar_select 0, %s5, %s3
  $region1: #{tpu_custom_call.1} parent=0
    #allocation2 [shape = 'u8[1024]{0}', space=vmem, size = 0x400, scoped, tag = 'input window, operand 0, single buffered']
    #allocation3 [shape = 's32[1]{0}', space=sflag, size = 0x4, scoped, tag = 'scoped memory for tpu_custom_call.1']
    #allocation4 [shape = 's32[1]{0}', space=sflag, size = 0x4, scoped, tag = 'scoped memory for tpu_custom_call.1']
    #allocation5 [shape = 'u8[1024]{0}', space=vmem, size = 0x400, scoped, tag = 'output window, operand 0, single buffered']
    %7 = vsyncpa [#allocation3], 0
    %8 = vsyncpa [#allocation4], 0
    // Predicated region
    $region2: #{tpu_custom_call.1} parent=1 // pred_check
      _
    $region3: #{tpu_custom_call.1} parent=1 // pred_check_branch
      %10 = sbr.rel (0) target = $region5
    $region4: #{tpu_custom_call.1} parent=1 // pred_region
      %s12 = ssub.s32 32, 32
      %13 = vsyncadd [#allocation3], %s12
      %s15 = sshll.u32 [#allocation2], 4
      %s16 = int_to_ptr.vmem [resolvable:$true] %s15
      %18 = dma.hbm_to_vmem [thread:$0]  %s0, 32, %s16, [#allocation3]
    $region5: #{tpu_custom_call.1} parent=1 // pred_fallthru
      _
    // Predicated region
    $region6: #{tpu_custom_call.1} parent=1 // pred_check
      _
    $region7: #{tpu_custom_call.1} parent=1 // pred_check_branch
      %20 = sbr.rel (0) target = $region9
    $region8: #{tpu_custom_call.1} parent=1 // pred_region
      _
    $region9: #{tpu_custom_call.1} parent=1 // pred_fallthru
      _
    // Predicated region
    $region10: #{tpu_custom_call.1} parent=1 // pred_check
      _
    $region11: #{tpu_custom_call.1} parent=1 // pred_check_branch
      %22 = sbr.rel (0) target = $region13
    $region12: #{tpu_custom_call.1} parent=1 // pred_region
      %23 = dma.done [#allocation3], 32
    $region13: #{tpu_custom_call.1} parent=1 // pred_fallthru
      _
    %s24 = smul.u32 0, 8
    %s25 = scvt.s32.f32 %s24
    %v26 = vld [vmem:[#allocation2] sm:$0x3]
    %v27 = vld [vmem:[%s1] sm:$0x1]
    %v28 = vstv %s25
    %v29 = vmul.f32 %v28, %v27
    %v31 = vlaneseq
    %v32 = vshrl.u32 %v31, 7
    %v33 = vsub.s32 0, %v32
    %v34 = vrot.slane %v29, %v33
    %v36 = vadd.f32 %v26, %v34
    %37 = vst [vmem:[#allocation5] sm:$0x3] %v36
    // Predicated region
    $region14: #{tpu_custom_call.1} parent=1 // pred_check
      _
    $region15: #{tpu_custom_call.1} parent=1 // pred_check_branch
      %39 = sbr.rel (0) target = $region17
    $region16: #{tpu_custom_call.1} parent=1 // pred_region
      %s41 = ssub.s32 32, 32
      %42 = vsyncadd [#allocation4], %s41
      %s44 = sshll.u32 [#allocation5], 4
      %s45 = int_to_ptr.vmem [resolvable:$true] %s44
      %47 = dma.vmem_to_hbm [thread:$0]  %s45, 32, %s2, [#allocation4]
    $region17: #{tpu_custom_call.1} parent=1 // pred_fallthru
      _
    // Predicated region
    $region18: #{tpu_custom_call.1} parent=1 // pred_check
      _
    $region19: #{tpu_custom_call.1} parent=1 // pred_check_branch
      %49 = sbr.rel (0) target = $region21
    $region20: #{tpu_custom_call.1} parent=1 // pred_region
      %50 = dma.done [#allocation4], 32
    $region21: #{tpu_custom_call.1} parent=1 // pred_fallthru
      _
    %51 = vsyncpa [#allocation3], 1
    %52 = vsyncpa [#allocation4], 1

</llo_original>
